<compile_context>
chip_gen: v5e
topology: v5e:2x2
jax: 0.10.0
libtpu: 0.0.40
codegen_flags: <defaults>
</compile_context>

<pallas_src>
import functools
import math

import jax
import jax.numpy as jnp
from jax.experimental import pallas as pl
from jax.experimental.pallas import tpu as pltpu

LANES = 128


# ------------- layer-parameter helpers (mirror the PyTorch code) --------------

def get_prime_number_in_a_range(start, end):
    prime_list = []
    for val in range(start, end + 1):
        prime_or_not = True
        for n in range(2, val):
            if val % n == 0:
                prime_or_not = False
                break
        if prime_or_not:
            prime_list.append(val)
    return prime_list


def get_out_channel_number(parameter_layer, in_channel, prime_list):
    return int(parameter_layer / (in_channel * sum(prime_list)))


def generate_layer_parameter_list(start, end, parameter_number_of_layer_list, in_channel=1):
    prime_list = get_prime_number_in_a_range(start, end)
    layer_parameter_list = []
    for p in parameter_number_of_layer_list:
        out_channel = get_out_channel_number(p, in_channel, prime_list)
        tuples_in_layer = [(in_channel, out_channel, prime) for prime in prime_list]
        in_channel = len(prime_list) * out_channel
        layer_parameter_list.append(tuples_in_layer)
    tuples_in_layer_last = []
    first_out_channel = len(prime_list) * get_out_channel_number(
        parameter_number_of_layer_list[0], 1, prime_list)
    tuples_in_layer_last.append((in_channel, first_out_channel, 1))
    tuples_in_layer_last.append((in_channel, first_out_channel, 2))
    layer_parameter_list.append(tuples_in_layer_last)
    return layer_parameter_list


# ------------------------------ fused kernel ----------------------------------

def fused_omniscale_kernel(*refs, num_layers, layer_kmax, layer_cin, B, L, top, eps):
    """Whole OmniScaleCNN forward in one kernel.

    refs = [x_padded,
            (w_fused, gamma, beta) * num_layers,
            w_lin, b_lin,
            out,
            pad_scratch]

    x_padded: (B, L, 128)        f32  (channels zero-padded to 128 lanes)
    w_fused:  (128, 128)         bf16 (row j*cin+c = tap j / channel c, interleaved)
    gamma/beta: (1, 128)         f32  (zero beyond cout)
    w_lin:    (128, num_cls)     bf16 (zero rows beyond C_final)
    b_lin:    (1, num_cls)       f32
    out:      (B, num_cls)       f32
    pad_scratch: (B, top+L+bottom, 128) f32 VMEM
    """
    n_in = 1 + 3 * num_layers + 2
    x_ref = refs[0]
    w_lin_ref = refs[n_in - 2]
    b_lin_ref = refs[n_in - 1]
    o_ref = refs[n_in]
    pad_ref = refs[n_in + 1]

    # Zero the scratch ONCE: margin rows (and lanes beyond the live channel
    # count) stay zero for the whole kernel; interior rows are fully overwritten
    # by every layer's dense 128-lane store, so no per-layer re-zeroing.
    pad_ref[...] = jnp.zeros(pad_ref.shape, pad_ref.dtype)
    # Layer-0 input was lane-padded to 128 in the wrapper -> dense, aligned store.
    pad_ref[:, top:top + L, :] = x_ref[...]

    inv_n = 1.0 / float(B * L)
    y = None
    for l in range(num_layers):
        w_ref = refs[1 + 3 * l]        # (128, 128) bf16, interleaved-tap rows
        g_ref = refs[2 + 3 * l]        # (1, 128) f32 (zero beyond cout)
        bt_ref = refs[3 + 3 * l]       # (1, 128) f32 (zero beyond cout)
        K = layer_kmax[l]
        cin = layer_cin[l]
        left = (K - 1) // 2
        base = top - left

        if l > 0:
            # Previous layer's ReLU output becomes this layer's input: one dense
            # aligned 128-lane store, no extra activation copy, no re-zeroing
            # (lanes >= cin of y are exact zeros by construction).
            pad_ref[:, top:top + L, :] = y

        # Interleaved im2col: tap j's channels go to lanes [j*cin, (j+1)*cin)
        # via an XLU lane roll; merge by add (one side is always zero), then ONE
        # 128-deep MXU matmul per layer instead of K 128-deep matmuls.
        xcol = pad_ref[:, base:base + L, :].reshape(B * L, LANES)
        for j in range(1, K):
            win = pad_ref[:, base + j:base + j + L, :].reshape(B * L, LANES)
            xcol = xcol + pltpu.roll(win, shift=j * cin, axis=1)

        acc = jnp.dot(xcol.astype(jnp.bfloat16), w_ref[...],
                      preferred_element_type=jnp.float32)            # (B*L, 128)

        # Training-mode BatchNorm1d folded to one scale/shift + fused ReLU,
        # statistics in ONE pass (sum / sum-of-squares), f32, var clamped at 0.
        # (Conv bias omitted: training-mode mean subtraction cancels it exactly.)
        s1 = jnp.sum(acc, axis=0, keepdims=True)
        s2 = jnp.sum(acc * acc, axis=0, keepdims=True)
        mean = s1 * inv_n
        var = jnp.maximum(s2 * inv_n - mean * mean, 0.0)
        scale = g_ref[...] * jax.lax.rsqrt(var + eps)
        shift = bt_ref[...] - mean * scale
        # gamma/beta/weight columns are zero beyond cout -> lanes >= cout of y
        # are exactly 0, which the next layer's roll-merge and the head rely on.
        y = jnp.maximum(acc * scale + shift, 0.0).reshape(B, L, LANES)

    # Head: AdaptiveAvgPool1d(1) + Linear + log_softmax, no HBM round-trip.
    pooled = jnp.mean(y, axis=1)                                      # (B, 128)
    logits = jnp.dot(pooled.astype(jnp.bfloat16), w_lin_ref[...],
                     preferred_element_type=jnp.float32) + b_lin_ref[...]
    m = jnp.max(logits, axis=-1, keepdims=True)
    shifted = logits - m
    lse = jnp.log(jnp.sum(jnp.exp(shifted), axis=-1, keepdims=True))
    o_ref[...] = shifted - lse


# ------------------------------- wrappers --------------------------------------

def _full_spec(shape):
    zeros = (0,) * len(shape)
    return pl.BlockSpec(shape, lambda i, _z=zeros: _z)


def omniscale_cnn_forward(x, packed_layers, head_params):
    """x: (B, sequencelength, input_dim) channels-last -> log-probs (B, num_classes)."""
    B, L, input_dim = x.shape
    w_lin, b_lin = head_params
    num_classes = w_lin.shape[1]
    num_layers = len(packed_layers)

    kmaxes = tuple(p["kmax"] for p in packed_layers)
    cins = tuple(p["cin"] for p in packed_layers)

    top = 8        # sublane-aligned interior start (covers every layer's left pad)
    bottom = 8     # >= max(K-1-left) over layers
    rows = top + L + bottom

    # Pre-pad the channel (lane) dim to 128 in the wrapper: dense HBM->VMEM DMA
    # and an unmasked layer-0 scratch fill.
    xp = jnp.zeros((B, L, LANES), jnp.float32).at[:, :, :input_dim].set(x)

    inputs = [xp]
    in_specs = [_full_spec(xp.shape)]
    for p in packed_layers:
        inputs += [p["w"], p["gamma"], p["beta"]]
        in_specs += [_full_spec(p["w"].shape), _full_spec(p["gamma"].shape),
                     _full_spec(p["beta"].shape)]
    inputs += [w_lin, b_lin]
    in_specs += [_full_spec(w_lin.shape), _full_spec(b_lin.shape)]

    kernel = functools.partial(
        fused_omniscale_kernel, num_layers=num_layers, layer_kmax=kmaxes,
        layer_cin=cins, B=B, L=L, top=top, eps=1e-5)

    # NOTE: no "parallel" grid axis is used: training-mode BN needs full-batch
    # statistics and the layers are sequentially dependent, so the toy-sized
    # forward runs as a single grid step entirely in VMEM.
    # TODO(synk): for non-toy B*L, tile L on the grid with two-pass BN (per-tile
    # sum/sumsq accumulators + pl.when finalize), switch the scratch to bf16 and
    # mark the L axis "parallel" so the working set fits v7x's 64 MiB VMEM and
    # its second TensorCore is used.
    return pl.pallas_call(
        kernel,
        out_shape=jax.ShapeDtypeStruct((B, num_classes), jnp.float32),
        grid=(1,),
        in_specs=in_specs,
        out_specs=_full_spec((B, num_classes)),
        scratch_shapes=[pltpu.VMEM((B, rows, LANES), jnp.float32)],
        compiler_params=pltpu.CompilerParams(
            dimension_semantics=("arbitrary",),
            vmem_limit_bytes=16 * 1024 * 1024),
    )(*inputs)


# --------------------------- parameter packing ----------------------------------

def pack_layer(branch_params):
    """Pack all branches of one layer into a single interleaved fused conv weight.

    branch_params: list of (w (k, cin, cout_b), gamma (cout_b,), beta (cout_b,), k).
    Returns a (128, 128) bf16 weight whose row (j*cin + c) holds fused-tap j /
    input channel c.  Each branch's taps are placed at fused-tap offset
    (kmax-1)//2 - (k-1)//2 so one kmax "same"-padded im2col reproduces every
    branch's "same" conv (PyTorch pads (floor((k-1)/2), floor(k/2))).  Output
    columns of all branches are concatenated and zero-padded to 128 lanes;
    gamma/beta are zero-padded likewise so padded lanes stay exactly zero.
    """
    kmax = max(ks for (_, _, _, ks) in branch_params)
    left_max = (kmax - 1) // 2
    cin = branch_params[0][0].shape[1]
    cout_total = sum(w.shape[2] for (w, _, _, _) in branch_params)
    if kmax * cin > LANES:
        # TODO(synk): tile the contraction (per-tap accumulating matmuls) when
        # K*cin exceeds 128 lanes; not needed at this model size.
        raise NotImplementedError(f"K*cin = {kmax * cin} > {LANES}")
    if cout_total > LANES:
        raise NotImplementedError(f"cout = {cout_total} > {LANES}")

    wf = jnp.zeros((LANES, LANES), jnp.float32)
    gamma = jnp.zeros((1, LANES), jnp.float32)
    beta = jnp.zeros((1, LANES), jnp.float32)
    off = 0
    for (w, g, b, ks) in branch_params:
        cout_b = w.shape[2]
        tap_off = left_max - (ks - 1) // 2
        for j in range(ks):
            r0 = (j + tap_off) * cin
            wf = wf.at[r0:r0 + cin, off:off + cout_b].set(w[j])
        gamma = gamma.at[0, off:off + cout_b].set(g)
        beta = beta.at[0, off:off + cout_b].set(b)
        off += cout_b
    return dict(w=wf.astype(jnp.bfloat16), gamma=gamma, beta=beta,
                kmax=kmax, cin=cin, cout=cout_total)


def init_params(key, layer_parameter_list, num_classes):
    packed_layers = []
    for layer in layer_parameter_list:
        branch_params = []
        for (cin_b, cout_b, ksize) in layer:
            key, kw = jax.random.split(key)
            bound = 1.0 / math.sqrt(cin_b * ksize)
            w = jax.random.uniform(kw, (ksize, cin_b, cout_b), jnp.float32, -bound, bound)
            gamma = jnp.ones((cout_b,), jnp.float32)   # BN defaults: weight=1
            beta = jnp.zeros((cout_b,), jnp.float32)   #              bias=0
            # Conv bias is not created: under training-mode BN it is a strict no-op.
            branch_params.append((w, gamma, beta, ksize))
        packed_layers.append(pack_layer(branch_params))

    c_final = packed_layers[-1]["cout"]
    key, kw, kb = jax.random.split(key, 3)
    bound = 1.0 / math.sqrt(c_final)
    w_lin = jnp.zeros((LANES, num_classes), jnp.float32)
    w_lin = w_lin.at[:c_final, :].set(
        jax.random.uniform(kw, (c_final, num_classes), jnp.float32, -bound, bound))
    b_lin = jax.random.uniform(kb, (1, num_classes), jnp.float32, -bound, bound)
    return packed_layers, (w_lin.astype(jnp.bfloat16), b_lin)


# ----------------------------------- main ---------------------------------------

if __name__ == "__main__":
    B, seq_len, input_dim, num_classes = 2, 16, 4, 5
    # Small parameter budgets (constructor arg) to keep channel counts tiny:
    #   layer1: [(4,4,1),(4,4,2),(4,4,3)], layer2: [(12,3,1),(12,3,2),(12,3,3)],
    #   last:   [(9,48,1),(9,48,2)]  -> 96 output channels -> Linear(96, 5).
    parameter_number_of_layer_list = [96, 256]

    layer_parameter_list = generate_layer_parameter_list(
        1, seq_len // 4, parameter_number_of_layer_list, in_channel=input_dim)

    key = jax.random.PRNGKey(0)
    key, xkey = jax.random.split(key)
    x = jax.random.normal(xkey, (B, seq_len, input_dim), jnp.float32)

    packed_layers, head_params = init_params(key, layer_parameter_list, num_classes)

    fwd = jax.jit(lambda xx: omniscale_cnn_forward(xx, packed_layers, head_params))
    out = jax.block_until_ready(fwd(x))

    assert out.shape == (B, num_classes)
    assert bool(jnp.all(jnp.isfinite(out)))
    # rows of log_softmax must sum (in prob space) to 1
    assert bool(jnp.allclose(jnp.sum(jnp.exp(out), axis=-1), 1.0, atol=1e-4))
    print("KERNEL_OK")
</pallas_src>

<mosaic_0001>
module attributes {stable_mosaic.version = 11 : i64} {
  func.func @fused_omniscale_kernel(%arg0: i32, %arg1: memref<2x16x128xf32, #tpu.memory_space<vmem>>, %arg2: memref<128x128xbf16, #tpu.memory_space<vmem>>, %arg3: memref<1x128xf32, #tpu.memory_space<vmem>>, %arg4: memref<1x128xf32, #tpu.memory_space<vmem>>, %arg5: memref<128x128xbf16, #tpu.memory_space<vmem>>, %arg6: memref<1x128xf32, #tpu.memory_space<vmem>>, %arg7: memref<1x128xf32, #tpu.memory_space<vmem>>, %arg8: memref<128x128xbf16, #tpu.memory_space<vmem>>, %arg9: memref<1x128xf32, #tpu.memory_space<vmem>>, %arg10: memref<1x128xf32, #tpu.memory_space<vmem>>, %arg11: memref<128x5xbf16, #tpu.memory_space<vmem>>, %arg12: memref<1x5xf32, #tpu.memory_space<vmem>>, %arg13: memref<2x5xf32, #tpu.memory_space<vmem>>, %arg14: memref<2x32x128xf32, #tpu.memory_space<vmem>>) attributes {dimension_semantics = [#tpu.dimension_semantics<arbitrary>], iteration_bounds = array<i64: 1>, scalar_prefetch = 0 : i64, scratch_operands = 1 : i64, tpu.core_type = #tpu.core_type<tc>, window_params = [{pipeline_mode = #tpu.pipeline_mode<synchronous>, transform_indices = @transform_0, window_bounds = array<i64: 2, 16, 128>}, {pipeline_mode = #tpu.pipeline_mode<synchronous>, transform_indices = @transform_1, window_bounds = array<i64: 128, 128>}, {pipeline_mode = #tpu.pipeline_mode<synchronous>, transform_indices = @transform_2, window_bounds = array<i64: 1, 128>}, {pipeline_mode = #tpu.pipeline_mode<synchronous>, transform_indices = @transform_3, window_bounds = array<i64: 1, 128>}, {pipeline_mode = #tpu.pipeline_mode<synchronous>, transform_indices = @transform_4, window_bounds = array<i64: 128, 128>}, {pipeline_mode = #tpu.pipeline_mode<synchronous>, transform_indices = @transform_5, window_bounds = array<i64: 1, 128>}, {pipeline_mode = #tpu.pipeline_mode<synchronous>, transform_indices = @transform_6, window_bounds = array<i64: 1, 128>}, {pipeline_mode = #tpu.pipeline_mode<synchronous>, transform_indices = @transform_7, window_bounds = array<i64: 128, 128>}, {pipeline_mode = #tpu.pipeline_mode<synchronous>, transform_indices = @transform_8, window_bounds = array<i64: 1, 128>}, {pipeline_mode = #tpu.pipeline_mode<synchronous>, transform_indices = @transform_9, window_bounds = array<i64: 1, 128>}, {pipeline_mode = #tpu.pipeline_mode<synchronous>, transform_indices = @transform_10, window_bounds = array<i64: 128, 5>}, {pipeline_mode = #tpu.pipeline_mode<synchronous>, transform_indices = @transform_11, window_bounds = array<i64: 1, 5>}, {pipeline_mode = #tpu.pipeline_mode<synchronous>, transform_indices = @transform_12, window_bounds = array<i64: 2, 5>}]} {
    %cst = arith.constant 0.000000e+00 : f32
    %0 = vector.broadcast %cst : f32 to vector<2x32x128xf32>
    %c0 = arith.constant 0 : index
    %c0_0 = arith.constant 0 : index
    %c0_1 = arith.constant 0 : index
    %1 = vector.load %arg14[%c0, %c0_0, %c0_1] : memref<2x32x128xf32, #tpu.memory_space<vmem>>, vector<2x32x128xf32>
    tpu.vector_store %arg14[%c0, %c0_0, %c0_1], %0 {strides = array<i32>} : memref<2x32x128xf32, #tpu.memory_space<vmem>>, vector<2x32x128xf32>,
    %c0_2 = arith.constant 0 : index
    %c0_3 = arith.constant 0 : index
    %c0_4 = arith.constant 0 : index
    %2 = vector.load %arg1[%c0_2, %c0_3, %c0_4] : memref<2x16x128xf32, #tpu.memory_space<vmem>>, vector<2x16x128xf32>
    %c0_5 = arith.constant 0 : index
    %c8 = arith.constant 8 : index
    %c0_6 = arith.constant 0 : index
    %3 = vector.load %arg14[%c0_5, %c8, %c0_6] : memref<2x32x128xf32, #tpu.memory_space<vmem>>, vector<2x16x128xf32>
    tpu.vector_store %arg14[%c0_5, %c8, %c0_6], %2 {strides = array<i32>} : memref<2x32x128xf32, #tpu.memory_space<vmem>>, vector<2x16x128xf32>,
    %c0_7 = arith.constant 0 : index
    %c7 = arith.constant 7 : index
    %c0_8 = arith.constant 0 : index
    %4 = vector.load %arg14[%c0_7, %c7, %c0_8] : memref<2x32x128xf32, #tpu.memory_space<vmem>>, vector<2x16x128xf32>
    %5 = vector.shape_cast %4 : vector<2x16x128xf32> to vector<32x128xf32>
    %c0_9 = arith.constant 0 : index
    %c8_10 = arith.constant 8 : index
    %c0_11 = arith.constant 0 : index
    %6 = vector.load %arg14[%c0_9, %c8_10, %c0_11] : memref<2x32x128xf32, #tpu.memory_space<vmem>>, vector<2x16x128xf32>
    %7 = vector.shape_cast %6 : vector<2x16x128xf32> to vector<32x128xf32>
    %c4_i32 = arith.constant 4 : i32
    %8 = tpu.dynamic_rotate %7 by %c4_i32 dim 1 : vector<32x128xf32>, i32 -> vector<32x128xf32>
    %9 = arith.addf %5, %8 : vector<32x128xf32>
    %c0_12 = arith.constant 0 : index
    %c9 = arith.constant 9 : index
    %c0_13 = arith.constant 0 : index
    %10 = vector.load %arg14[%c0_12, %c9, %c0_13] : memref<2x32x128xf32, #tpu.memory_space<vmem>>, vector<2x16x128xf32>
    %11 = vector.shape_cast %10 : vector<2x16x128xf32> to vector<32x128xf32>
    %c8_i32 = arith.constant 8 : i32
    %12 = tpu.dynamic_rotate %11 by %c8_i32 dim 1 : vector<32x128xf32>, i32 -> vector<32x128xf32>
    %13 = arith.addf %9, %12 : vector<32x128xf32>
    %14 = arith.truncf %13 : vector<32x128xf32> to vector<32x128xbf16>
    %c0_14 = arith.constant 0 : index
    %c0_15 = arith.constant 0 : index
    %15 = vector.load %arg2[%c0_14, %c0_15] : memref<128x128xbf16, #tpu.memory_space<vmem>>, vector<128x128xbf16>
    %cst_16 = arith.constant dense<0.000000e+00> : vector<32x128xf32>
    %16 = tpu.matmul %14, %15, %cst_16 {dimension_numbers = #tpu.dot_dimension_numbers<[1], [0], [0], [1], [0, 0, 1, 1], [], []>} : vector<32x128xbf16>, vector<128x128xbf16>, vector<32x128xf32> -> vector<32x128xf32>
    %cst_17 = arith.constant dense<0.000000e+00> : vector<128xf32>
    %17 = vector.multi_reduction <add>, %16, %cst_17 [0] : vector<32x128xf32> to vector<128xf32>
    %18 = vector.shape_cast %17 : vector<128xf32> to vector<1x128xf32>
    %19 = arith.mulf %16, %16 : vector<32x128xf32>
    %cst_18 = arith.constant dense<0.000000e+00> : vector<128xf32>
    %20 = vector.multi_reduction <add>, %19, %cst_18 [0] : vector<32x128xf32> to vector<128xf32>
    %21 = vector.shape_cast %20 : vector<128xf32> to vector<1x128xf32>
    %cst_19 = arith.constant 3.125000e-02 : f32
    %22 = vector.broadcast %cst_19 : f32 to vector<1x128xf32>
    %23 = arith.mulf %18, %22 : vector<1x128xf32>
    %cst_20 = arith.constant 3.125000e-02 : f32
    %24 = vector.broadcast %cst_20 : f32 to vector<1x128xf32>
    %25 = arith.mulf %21, %24 : vector<1x128xf32>
    %26 = arith.mulf %23, %23 : vector<1x128xf32>
    %27 = arith.subf %25, %26 : vector<1x128xf32>
    %cst_21 = arith.constant 0.000000e+00 : f32
    %28 = vector.broadcast %cst_21 : f32 to vector<1x128xf32>
    %29 = arith.maximumf %27, %28 : vector<1x128xf32>
    %c0_22 = arith.constant 0 : index
    %c0_23 = arith.constant 0 : index
    %30 = vector.load %arg3[%c0_22, %c0_23] : memref<1x128xf32, #tpu.memory_space<vmem>>, vector<1x128xf32>
    %cst_24 = arith.constant 9.99999974E-6 : f32
    %31 = vector.broadcast %cst_24 : f32 to vector<1x128xf32>
    %32 = arith.addf %29, %31 : vector<1x128xf32>
    %33 = math.rsqrt %32 : vector<1x128xf32>
    %34 = arith.mulf %30, %33 : vector<1x128xf32>
    %c0_25 = arith.constant 0 : index
    %c0_26 = arith.constant 0 : index
    %35 = vector.load %arg4[%c0_25, %c0_26] : memref<1x128xf32, #tpu.memory_space<vmem>>, vector<1x128xf32>
    %36 = arith.mulf %23, %34 : vector<1x128xf32>
    %37 = arith.subf %35, %36 : vector<1x128xf32>
    %38 = vector.broadcast %34 : vector<1x128xf32> to vector<32x128xf32>
    %39 = arith.mulf %16, %38 : vector<32x128xf32>
    %40 = vector.broadcast %37 : vector<1x128xf32> to vector<32x128xf32>
    %41 = arith.addf %39, %40 : vector<32x128xf32>
    %cst_27 = arith.constant 0.000000e+00 : f32
    %42 = vector.broadcast %cst_27 : f32 to vector<32x128xf32>
    %43 = arith.maximumf %41, %42 : vector<32x128xf32>
    %44 = vector.shape_cast %43 : vector<32x128xf32> to vector<2x16x128xf32>
    %c0_28 = arith.constant 0 : index
    %c8_29 = arith.constant 8 : index
    %c0_30 = arith.constant 0 : index
    %45 = vector.load %arg14[%c0_28, %c8_29, %c0_30] : memref<2x32x128xf32, #tpu.memory_space<vmem>>, vector<2x16x128xf32>
    tpu.vector_store %arg14[%c0_28, %c8_29, %c0_30], %44 {strides = array<i32>} : memref<2x32x128xf32, #tpu.memory_space<vmem>>, vector<2x16x128xf32>,
    %c0_31 = arith.constant 0 : index
    %c7_32 = arith.constant 7 : index
    %c0_33 = arith.constant 0 : index
    %46 = vector.load %arg14[%c0_31, %c7_32, %c0_33] : memref<2x32x128xf32, #tpu.memory_space<vmem>>, vector<2x16x128xf32>
    %47 = vector.shape_cast %46 : vector<2x16x128xf32> to vector<32x128xf32>
    %c0_34 = arith.constant 0 : index
    %c8_35 = arith.constant 8 : index
    %c0_36 = arith.constant 0 : index
    %48 = vector.load %arg14[%c0_34, %c8_35, %c0_36] : memref<2x32x128xf32, #tpu.memory_space<vmem>>, vector<2x16x128xf32>
    %49 = vector.shape_cast %48 : vector<2x16x128xf32> to vector<32x128xf32>
    %c12_i32 = arith.constant 12 : i32
    %50 = tpu.dynamic_rotate %49 by %c12_i32 dim 1 : vector<32x128xf32>, i32 -> vector<32x128xf32>
    %51 = arith.addf %47, %50 : vector<32x128xf32>
    %c0_37 = arith.constant 0 : index
    %c9_38 = arith.constant 9 : index
    %c0_39 = arith.constant 0 : index
    %52 = vector.load %arg14[%c0_37, %c9_38, %c0_39] : memref<2x32x128xf32, #tpu.memory_space<vmem>>, vector<2x16x128xf32>
    %53 = vector.shape_cast %52 : vector<2x16x128xf32> to vector<32x128xf32>
    %c24_i32 = arith.constant 24 : i32
    %54 = tpu.dynamic_rotate %53 by %c24_i32 dim 1 : vector<32x128xf32>, i32 -> vector<32x128xf32>
    %55 = arith.addf %51, %54 : vector<32x128xf32>
    %56 = arith.truncf %55 : vector<32x128xf32> to vector<32x128xbf16>
    %c0_40 = arith.constant 0 : index
    %c0_41 = arith.constant 0 : index
    %57 = vector.load %arg5[%c0_40, %c0_41] : memref<128x128xbf16, #tpu.memory_space<vmem>>, vector<128x128xbf16>
    %cst_42 = arith.constant dense<0.000000e+00> : vector<32x128xf32>
    %58 = tpu.matmul %56, %57, %cst_42 {dimension_numbers = #tpu.dot_dimension_numbers<[1], [0], [0], [1], [0, 0, 1, 1], [], []>} : vector<32x128xbf16>, vector<128x128xbf16>, vector<32x128xf32> -> vector<32x128xf32>
    %cst_43 = arith.constant dense<0.000000e+00> : vector<128xf32>
    %59 = vector.multi_reduction <add>, %58, %cst_43 [0] : vector<32x128xf32> to vector<128xf32>
    %60 = vector.shape_cast %59 : vector<128xf32> to vector<1x128xf32>
    %61 = arith.mulf %58, %58 : vector<32x128xf32>
    %cst_44 = arith.constant dense<0.000000e+00> : vector<128xf32>
    %62 = vector.multi_reduction <add>, %61, %cst_44 [0] : vector<32x128xf32> to vector<128xf32>
    %63 = vector.shape_cast %62 : vector<128xf32> to vector<1x128xf32>
    %cst_45 = arith.constant 3.125000e-02 : f32
    %64 = vector.broadcast %cst_45 : f32 to vector<1x128xf32>
    %65 = arith.mulf %60, %64 : vector<1x128xf32>
    %cst_46 = arith.constant 3.125000e-02 : f32
    %66 = vector.broadcast %cst_46 : f32 to vector<1x128xf32>
    %67 = arith.mulf %63, %66 : vector<1x128xf32>
    %68 = arith.mulf %65, %65 : vector<1x128xf32>
    %69 = arith.subf %67, %68 : vector<1x128xf32>
    %cst_47 = arith.constant 0.000000e+00 : f32
    %70 = vector.broadcast %cst_47 : f32 to vector<1x128xf32>
    %71 = arith.maximumf %69, %70 : vector<1x128xf32>
    %c0_48 = arith.constant 0 : index
    %c0_49 = arith.constant 0 : index
    %72 = vector.load %arg6[%c0_48, %c0_49] : memref<1x128xf32, #tpu.memory_space<vmem>>, vector<1x128xf32>
    %cst_50 = arith.constant 9.99999974E-6 : f32
    %73 = vector.broadcast %cst_50 : f32 to vector<1x128xf32>
    %74 = arith.addf %71, %73 : vector<1x128xf32>
    %75 = math.rsqrt %74 : vector<1x128xf32>
    %76 = arith.mulf %72, %75 : vector<1x128xf32>
    %c0_51 = arith.constant 0 : index
    %c0_52 = arith.constant 0 : index
    %77 = vector.load %arg7[%c0_51, %c0_52] : memref<1x128xf32, #tpu.memory_space<vmem>>, vector<1x128xf32>
    %78 = arith.mulf %65, %76 : vector<1x128xf32>
    %79 = arith.subf %77, %78 : vector<1x128xf32>
    %80 = vector.broadcast %76 : vector<1x128xf32> to vector<32x128xf32>
    %81 = arith.mulf %58, %80 : vector<32x128xf32>
    %82 = vector.broadcast %79 : vector<1x128xf32> to vector<32x128xf32>
    %83 = arith.addf %81, %82 : vector<32x128xf32>
    %cst_53 = arith.constant 0.000000e+00 : f32
    %84 = vector.broadcast %cst_53 : f32 to vector<32x128xf32>
    %85 = arith.maximumf %83, %84 : vector<32x128xf32>
    %86 = vector.shape_cast %85 : vector<32x128xf32> to vector<2x16x128xf32>
    %c0_54 = arith.constant 0 : index
    %c8_55 = arith.constant 8 : index
    %c0_56 = arith.constant 0 : index
    %87 = vector.load %arg14[%c0_54, %c8_55, %c0_56] : memref<2x32x128xf32, #tpu.memory_space<vmem>>, vector<2x16x128xf32>
    tpu.vector_store %arg14[%c0_54, %c8_55, %c0_56], %86 {strides = array<i32>} : memref<2x32x128xf32, #tpu.memory_space<vmem>>, vector<2x16x128xf32>,
    %c0_57 = arith.constant 0 : index
    %c8_58 = arith.constant 8 : index
    %c0_59 = arith.constant 0 : index
    %88 = vector.load %arg14[%c0_57, %c8_58, %c0_59] : memref<2x32x128xf32, #tpu.memory_space<vmem>>, vector<2x16x128xf32>
    %89 = vector.shape_cast %88 : vector<2x16x128xf32> to vector<32x128xf32>
    %c0_60 = arith.constant 0 : index
    %c9_61 = arith.constant 9 : index
    %c0_62 = arith.constant 0 : index
    %90 = vector.load %arg14[%c0_60, %c9_61, %c0_62] : memref<2x32x128xf32, #tpu.memory_space<vmem>>, vector<2x16x128xf32>
    %91 = vector.shape_cast %90 : vector<2x16x128xf32> to vector<32x128xf32>
    %c9_i32 = arith.constant 9 : i32
    %92 = tpu.dynamic_rotate %91 by %c9_i32 dim 1 : vector<32x128xf32>, i32 -> vector<32x128xf32>
    %93 = arith.addf %89, %92 : vector<32x128xf32>
    %94 = arith.truncf %93 : vector<32x128xf32> to vector<32x128xbf16>
    %c0_63 = arith.constant 0 : index
    %c0_64 = arith.constant 0 : index
    %95 = vector.load %arg8[%c0_63, %c0_64] : memref<128x128xbf16, #tpu.memory_space<vmem>>, vector<128x128xbf16>
    %cst_65 = arith.constant dense<0.000000e+00> : vector<32x128xf32>
    %96 = tpu.matmul %94, %95, %cst_65 {dimension_numbers = #tpu.dot_dimension_numbers<[1], [0], [0], [1], [0, 0, 1, 1], [], []>} : vector<32x128xbf16>, vector<128x128xbf16>, vector<32x128xf32> -> vector<32x128xf32>
    %cst_66 = arith.constant dense<0.000000e+00> : vector<128xf32>
    %97 = vector.multi_reduction <add>, %96, %cst_66 [0] : vector<32x128xf32> to vector<128xf32>
    %98 = vector.shape_cast %97 : vector<128xf32> to vector<1x128xf32>
    %99 = arith.mulf %96, %96 : vector<32x128xf32>
    %cst_67 = arith.constant dense<0.000000e+00> : vector<128xf32>
    %100 = vector.multi_reduction <add>, %99, %cst_67 [0] : vector<32x128xf32> to vector<128xf32>
    %101 = vector.shape_cast %100 : vector<128xf32> to vector<1x128xf32>
    %cst_68 = arith.constant 3.125000e-02 : f32
    %102 = vector.broadcast %cst_68 : f32 to vector<1x128xf32>
    %103 = arith.mulf %98, %102 : vector<1x128xf32>
    %cst_69 = arith.constant 3.125000e-02 : f32
    %104 = vector.broadcast %cst_69 : f32 to vector<1x128xf32>
    %105 = arith.mulf %101, %104 : vector<1x128xf32>
    %106 = arith.mulf %103, %103 : vector<1x128xf32>
    %107 = arith.subf %105, %106 : vector<1x128xf32>
    %cst_70 = arith.constant 0.000000e+00 : f32
    %108 = vector.broadcast %cst_70 : f32 to vector<1x128xf32>
    %109 = arith.maximumf %107, %108 : vector<1x128xf32>
    %c0_71 = arith.constant 0 : index
    %c0_72 = arith.constant 0 : index
    %110 = vector.load %arg9[%c0_71, %c0_72] : memref<1x128xf32, #tpu.memory_space<vmem>>, vector<1x128xf32>
    %cst_73 = arith.constant 9.99999974E-6 : f32
    %111 = vector.broadcast %cst_73 : f32 to vector<1x128xf32>
    %112 = arith.addf %109, %111 : vector<1x128xf32>
    %113 = math.rsqrt %112 : vector<1x128xf32>
    %114 = arith.mulf %110, %113 : vector<1x128xf32>
    %c0_74 = arith.constant 0 : index
    %c0_75 = arith.constant 0 : index
    %115 = vector.load %arg10[%c0_74, %c0_75] : memref<1x128xf32, #tpu.memory_space<vmem>>, vector<1x128xf32>
    %116 = arith.mulf %103, %114 : vector<1x128xf32>
    %117 = arith.subf %115, %116 : vector<1x128xf32>
    %118 = vector.broadcast %114 : vector<1x128xf32> to vector<32x128xf32>
    %119 = arith.mulf %96, %118 : vector<32x128xf32>
    %120 = vector.broadcast %117 : vector<1x128xf32> to vector<32x128xf32>
    %121 = arith.addf %119, %120 : vector<32x128xf32>
    %cst_76 = arith.constant 0.000000e+00 : f32
    %122 = vector.broadcast %cst_76 : f32 to vector<32x128xf32>
    %123 = arith.maximumf %121, %122 : vector<32x128xf32>
    %124 = vector.shape_cast %123 : vector<32x128xf32> to vector<2x16x128xf32>
    %cst_77 = arith.constant dense<0.000000e+00> : vector<2x128xf32>
    %125 = vector.multi_reduction <add>, %124, %cst_77 [1] : vector<2x16x128xf32> to vector<2x128xf32>
    %cst_78 = arith.constant 1.600000e+01 : f32
    %126 = vector.broadcast %cst_78 : f32 to vector<2x128xf32>
    %127 = arith.divf %125, %126 : vector<2x128xf32>
    %128 = arith.truncf %127 : vector<2x128xf32> to vector<2x128xbf16>
    %c0_79 = arith.constant 0 : index
    %c0_80 = arith.constant 0 : index
    %129 = vector.load %arg11[%c0_79, %c0_80] : memref<128x5xbf16, #tpu.memory_space<vmem>>, vector<128x5xbf16>
    %cst_81 = arith.constant dense<0.000000e+00> : vector<2x5xf32>
    %130 = tpu.matmul %128, %129, %cst_81 {dimension_numbers = #tpu.dot_dimension_numbers<[1], [0], [0], [1], [0, 0, 1, 1], [], []>} : vector<2x128xbf16>, vector<128x5xbf16>, vector<2x5xf32> -> vector<2x5xf32>
    %c0_82 = arith.constant 0 : index
    %c0_83 = arith.constant 0 : index
    %131 = vector.load %arg12[%c0_82, %c0_83] : memref<1x5xf32, #tpu.memory_space<vmem>>, vector<1x5xf32>
    %132 = vector.broadcast %131 : vector<1x5xf32> to vector<2x5xf32>
    %133 = arith.addf %130, %132 : vector<2x5xf32>
    %cst_84 = arith.constant dense<0xFF800000> : vector<2xf32>
    %134 = vector.multi_reduction <maximumf>, %133, %cst_84 [1] : vector<2x5xf32> to vector<2xf32>
    %135 = vector.shape_cast %134 : vector<2xf32> to vector<2x1xf32>
    %136 = vector.broadcast %135 : vector<2x1xf32> to vector<2x5xf32>
    %137 = arith.subf %133, %136 : vector<2x5xf32>
    %138 = math.exp %137 : vector<2x5xf32>
    %cst_85 = arith.constant dense<0.000000e+00> : vector<2xf32>
    %139 = vector.multi_reduction <add>, %138, %cst_85 [1] : vector<2x5xf32> to vector<2xf32>
    %140 = vector.shape_cast %139 : vector<2xf32> to vector<2x1xf32>
    %141 = math.log %140 : vector<2x1xf32>
    %142 = vector.broadcast %141 : vector<2x1xf32> to vector<2x5xf32>
    %143 = arith.subf %137, %142 : vector<2x5xf32>
    %c0_86 = arith.constant 0 : index
    %c0_87 = arith.constant 0 : index
    %144 = vector.load %arg13[%c0_86, %c0_87] : memref<2x5xf32, #tpu.memory_space<vmem>>, vector<2x5xf32>
    tpu.vector_store %arg13[%c0_86, %c0_87], %143 {strides = array<i32>} : memref<2x5xf32, #tpu.memory_space<vmem>>, vector<2x5xf32>,
    return
  }
  func.func @transform_0(%arg0: i32) -> (i32, i32, i32) {
    %c0_i32 = arith.constant 0 : i32
    %c0_i32_0 = arith.constant 0 : i32
    %c0_i32_1 = arith.constant 0 : i32
    %c0_i32_2 = arith.constant 0 : i32
    return %c0_i32, %c0_i32_0, %c0_i32_1 : i32, i32, i32
  }
  func.func @transform_1(%arg0: i32) -> (i32, i32) {
    %c0_i32 = arith.constant 0 : i32
    %c0_i32_0 = arith.constant 0 : i32
    %c0_i32_1 = arith.constant 0 : i32
    return %c0_i32, %c0_i32_0 : i32, i32
  }
  func.func @transform_2(%arg0: i32) -> (i32, i32) {
    %c0_i32 = arith.constant 0 : i32
    %c0_i32_0 = arith.constant 0 : i32
    %c0_i32_1 = arith.constant 0 : i32
    return %c0_i32, %c0_i32_0 : i32, i32
  }
  func.func @transform_3(%arg0: i32) -> (i32, i32) {
    %c0_i32 = arith.constant 0 : i32
    %c0_i32_0 = arith.constant 0 : i32
    %c0_i32_1 = arith.constant 0 : i32
    return %c0_i32, %c0_i32_0 : i32, i32
  }
  func.func @transform_4(%arg0: i32) -> (i32, i32) {
    %c0_i32 = arith.constant 0 : i32
    %c0_i32_0 = arith.constant 0 : i32
    %c0_i32_1 = arith.constant 0 : i32
    return %c0_i32, %c0_i32_0 : i32, i32
  }
  func.func @transform_5(%arg0: i32) -> (i32, i32) {
    %c0_i32 = arith.constant 0 : i32
    %c0_i32_0 = arith.constant 0 : i32
    %c0_i32_1 = arith.constant 0 : i32
    return %c0_i32, %c0_i32_0 : i32, i32
  }
  func.func @transform_6(%arg0: i32) -> (i32, i32) {
    %c0_i32 = arith.constant 0 : i32
    %c0_i32_0 = arith.constant 0 : i32
    %c0_i32_1 = arith.constant 0 : i32
    return %c0_i32, %c0_i32_0 : i32, i32
  }
  func.func @transform_7(%arg0: i32) -> (i32, i32) {
    %c0_i32 = arith.constant 0 : i32
    %c0_i32_0 = arith.constant 0 : i32
    %c0_i32_1 = arith.constant 0 : i32
    return %c0_i32, %c0_i32_0 : i32, i32
  }
  func.func @transform_8(%arg0: i32) -> (i32, i32) {
    %c0_i32 = arith.constant 0 : i32
    %c0_i32_0 = arith.constant 0 : i32
    %c0_i32_1 = arith.constant 0 : i32
    return %c0_i32, %c0_i32_0 : i32, i32
  }
  func.func @transform_9(%arg0: i32) -> (i32, i32) {
    %c0_i32 = arith.constant 0 : i32
    %c0_i32_0 = arith.constant 0 : i32
    %c0_i32_1 = arith.constant 0 : i32
    return %c0_i32, %c0_i32_0 : i32, i32
  }
  func.func @transform_10(%arg0: i32) -> (i32, i32) {
    %c0_i32 = arith.constant 0 : i32
    %c0_i32_0 = arith.constant 0 : i32
    %c0_i32_1 = arith.constant 0 : i32
    return %c0_i32, %c0_i32_0 : i32, i32
  }
  func.func @transform_11(%arg0: i32) -> (i32, i32) {
    %c0_i32 = arith.constant 0 : i32
    %c0_i32_0 = arith.constant 0 : i32
    %c0_i32_1 = arith.constant 0 : i32
    return %c0_i32, %c0_i32_0 : i32, i32
  }
  func.func @transform_12(%arg0: i32) -> (i32, i32) {
    %c0_i32 = arith.constant 0 : i32
    %c0_i32_0 = arith.constant 0 : i32
    %c0_i32_1 = arith.constant 0 : i32
    return %c0_i32, %c0_i32_0 : i32, i32
  }
}

</mosaic_0001>

<llo_original>
// kernel: _lambda_.1
$region0: #{_lambda_.1}
  #allocation0 [shape = 'u32[]', space=smem, size = 0x4, offset = 0x4, fixed_abs, tag = 'smem constant byte address 0x4 - core index']
  #allocation1 [shape = 'u32[72,128]{1,0:T(1,128)}', space=vmem, size = 0x9000, scoped, tag = 'internal scratch']
  #allocation2 [shape = 'f32[2,32,128]{2,1,0:T(8,128)}', space=vmem, size = 0x8000, scoped, tag = 'scratch operand']
  %s0 = inlined_call_operand.vmem [shape: f32[2,16,128], index: 0, kind: input, shape index: {}]
  %s1 = inlined_call_operand.vmem [shape: bf16[128,128], index: 1, kind: input, shape index: {}]
  %s2 = inlined_call_operand.vmem [shape: f32[1,128], index: 2, kind: input, shape index: {}]
  %s3 = inlined_call_operand.vmem [shape: f32[1,128], index: 3, kind: input, shape index: {}, may-alias: {3,6,9}]
  %s4 = inlined_call_operand.hbm [shape: bf16[128,128], index: 4, kind: input, shape index: {}]
  %s5 = inlined_call_operand.vmem [shape: f32[1,128], index: 5, kind: input, shape index: {}]
  %s6 = inlined_call_operand.vmem [shape: f32[1,128], index: 6, kind: input, shape index: {}, may-alias: {3,6,9}]
  %s7 = inlined_call_operand.hbm [shape: bf16[128,128], index: 7, kind: input, shape index: {}]
  %s8 = inlined_call_operand.vmem [shape: f32[1,128], index: 8, kind: input, shape index: {}]
  %s9 = inlined_call_operand.vmem [shape: f32[1,128], index: 9, kind: input, shape index: {}, may-alias: {3,6,9}]
  %s10 = inlined_call_operand.hbm [shape: bf16[128,5], index: 10, kind: input, shape index: {}]
  %s11 = inlined_call_operand.vmem [shape: f32[1,5], index: 11, kind: input, shape index: {}]
  %s12 = inlined_call_operand.hbm [shape: f32[2,5], index: 12, kind: output, shape index: {}]
  %s13 = sld [smem:[#allocation0]]
  $region70: #{_lambda_.1} parent=0
    _
  %s15 = ssub.s32 1, %s13
  %s16 = scalar_select 0, %s15, %s13
  $region1: #{_lambda_.1} parent=0
    #allocation3 [shape = 'u8[32768]{0}', space=vmem, size = 0x8000, scoped, tag = 'input window, operand 4, single buffered']
    #allocation4 [shape = 's32[1]{0}', space=sflag, size = 0x4, scoped, tag = 'scoped memory for _lambda_.1']
    #allocation5 [shape = 's32[1]{0}', space=sflag, size = 0x4, scoped, tag = 'scoped memory for _lambda_.1']
    #allocation6 [shape = 'u8[32768]{0}', space=vmem, size = 0x8000, scoped, tag = 'input window, operand 7, single buffered']
    #allocation7 [shape = 's32[1]{0}', space=sflag, size = 0x4, scoped, tag = 'scoped memory for _lambda_.1']
    #allocation8 [shape = 'u8[32768]{0}', space=vmem, size = 0x8000, scoped, tag = 'input window, operand 10, single buffered']
    #allocation9 [shape = 'u8[1024]{0}', space=vmem, size = 0x400, scoped, tag = 'output window, operand 0, single buffered']
    %17 = vsyncpa [#allocation4], 0
    %18 = vsyncpa [#allocation7], 0
    %19 = vsyncpa [#allocation5], 0
    // Predicated region
    $region2: #{_lambda_.1} parent=1 // pred_check
      _
    $region3: #{_lambda_.1} parent=1 // pred_check_branch
      %21 = sbr.rel (0) target = $region5
    $region4: #{_lambda_.1} parent=1 // pred_region
      _
    $region5: #{_lambda_.1} parent=1 // pred_fallthru
      _
    // Predicated region
    $region6: #{_lambda_.1} parent=1 // pred_check
      _
    $region7: #{_lambda_.1} parent=1 // pred_check_branch
      %23 = sbr.rel (0) target = $region9
    $region8: #{_lambda_.1} parent=1 // pred_region
      _
    $region9: #{_lambda_.1} parent=1 // pred_fallthru
      _
    // Predicated region
    $region10: #{_lambda_.1} parent=1 // pred_check
      _
    $region11: #{_lambda_.1} parent=1 // pred_check_branch
      %25 = sbr.rel (0) target = $region13
    $region12: #{_lambda_.1} parent=1 // pred_region
      _
    $region13: #{_lambda_.1} parent=1 // pred_fallthru
      _
    // Predicated region
    $region14: #{_lambda_.1} parent=1 // pred_check
      _
    $region15: #{_lambda_.1} parent=1 // pred_check_branch
      %27 = sbr.rel (0) target = $region17
    $region16: #{_lambda_.1} parent=1 // pred_region
      _
    $region17: #{_lambda_.1} parent=1 // pred_fallthru
      _
    // Predicated region
    $region18: #{_lambda_.1} parent=1 // pred_check
      _
    $region19: #{_lambda_.1} parent=1 // pred_check_branch
      %29 = sbr.rel (0) target = $region21
    $region20: #{_lambda_.1} parent=1 // pred_region
      %31 = vsyncadd [#allocation4], 0
      %s32 = sshll.u32 %s4, 4
      %s33 = int_to_ptr.hbm [resolvable:$true] %s32
      %s34 = sshll.u32 [#allocation3], 4
      %s35 = int_to_ptr.vmem [resolvable:$true] %s34
      %40 = dma.hbm_to_vmem [thread:$0]  %s33, 1024, %s35, [#allocation4], 64, 64, 4
    $region21: #{_lambda_.1} parent=1 // pred_fallthru
      _
    // Predicated region
    $region22: #{_lambda_.1} parent=1 // pred_check
      _
    $region23: #{_lambda_.1} parent=1 // pred_check_branch
      %42 = sbr.rel (0) target = $region25
    $region24: #{_lambda_.1} parent=1 // pred_region
      _
    $region25: #{_lambda_.1} parent=1 // pred_fallthru
      _
    // Predicated region
    $region26: #{_lambda_.1} parent=1 // pred_check
      _
    $region27: #{_lambda_.1} parent=1 // pred_check_branch
      %44 = sbr.rel (0) target = $region29
    $region28: #{_lambda_.1} parent=1 // pred_region
      _
    $region29: #{_lambda_.1} parent=1 // pred_fallthru
      _
    // Predicated region
    $region30: #{_lambda_.1} parent=1 // pred_check
      _
    $region31: #{_lambda_.1} parent=1 // pred_check_branch
      %46 = sbr.rel (0) target = $region33
    $region32: #{_lambda_.1} parent=1 // pred_region
      %48 = vsyncadd [#allocation7], 0
      %s49 = sshll.u32 %s7, 4
      %s50 = int_to_ptr.hbm [resolvable:$true] %s49
      %s51 = sshll.u32 [#allocation6], 4
      %s52 = int_to_ptr.vmem [resolvable:$true] %s51
      %57 = dma.hbm_to_vmem [thread:$0]  %s50, 1024, %s52, [#allocation7], 64, 64, 4
    $region33: #{_lambda_.1} parent=1 // pred_fallthru
      _
    // Predicated region
    $region34: #{_lambda_.1} parent=1 // pred_check
      _
    $region35: #{_lambda_.1} parent=1 // pred_check_branch
      %59 = sbr.rel (0) target = $region37
    $region36: #{_lambda_.1} parent=1 // pred_region
      _
    $region37: #{_lambda_.1} parent=1 // pred_fallthru
      _
    // Predicated region
    $region38: #{_lambda_.1} parent=1 // pred_check
      _
    $region39: #{_lambda_.1} parent=1 // pred_check_branch
      %61 = sbr.rel (0) target = $region41
    $region40: #{_lambda_.1} parent=1 // pred_region
      _
    $region41: #{_lambda_.1} parent=1 // pred_fallthru
      _
    // Predicated region
    $region42: #{_lambda_.1} parent=1 // pred_check
      _
    $region43: #{_lambda_.1} parent=1 // pred_check_branch
      %63 = sbr.rel (0) target = $region45
    $region44: #{_lambda_.1} parent=1 // pred_region
      %65 = vsyncadd [#allocation7], 0
      %s66 = sshll.u32 %s10, 4
      %s67 = int_to_ptr.hbm [resolvable:$true] %s66
      %s68 = sshll.u32 [#allocation8], 4
      %s69 = int_to_ptr.vmem [resolvable:$true] %s68
      %74 = dma.hbm_to_vmem [thread:$0]  %s67, 1024, %s69, [#allocation7], 64, 64, 4
    $region45: #{_lambda_.1} parent=1 // pred_fallthru
      _
    // Predicated region
    $region46: #{_lambda_.1} parent=1 // pred_check
      _
    $region47: #{_lambda_.1} parent=1 // pred_check_branch
      %76 = sbr.rel (0) target = $region49
    $region48: #{_lambda_.1} parent=1 // pred_region
      _
    $region49: #{_lambda_.1} parent=1 // pred_fallthru
      _
    // Predicated region
    $region50: #{_lambda_.1} parent=1 // pred_check
      _
    $region51: #{_lambda_.1} parent=1 // pred_check_branch
      %78 = sbr.rel (0) target = $region53
    $region52: #{_lambda_.1} parent=1 // pred_region
      %80 = dma.done [#allocation4], 1024
    $region53: #{_lambda_.1} parent=1 // pred_fallthru
      _
    // Predicated region
    $region54: #{_lambda_.1} parent=1 // pred_check
      _
    $region55: #{_lambda_.1} parent=1 // pred_check_branch
      %82 = sbr.rel (0) target = $region57
    $region56: #{_lambda_.1} parent=1 // pred_region
      %84 = dma.done [#allocation7], 1024
    $region57: #{_lambda_.1} parent=1 // pred_fallthru
      _
    // Predicated region
    $region58: #{_lambda_.1} parent=1 // pred_check
      _
    $region59: #{_lambda_.1} parent=1 // pred_check_branch
      %86 = sbr.rel (0) target = $region61
    $region60: #{_lambda_.1} parent=1 // pred_region
      %88 = dma.done [#allocation7], 1024
    $region61: #{_lambda_.1} parent=1 // pred_fallthru
      _
    %89 = vst [vmem:[#allocation2] sm:$0xff] 0.0
    %90 = vst [vmem:[#allocation2 + $0x8] sm:$0xff] 0.0
    %91 = vst [vmem:[#allocation2 + $0x10] sm:$0xff] 0.0
    %92 = vst [vmem:[#allocation2 + $0x18] sm:$0xff] 0.0
    %93 = vst [vmem:[#allocation2 + $0x20] sm:$0xff] 0.0
    %94 = vst [vmem:[#allocation2 + $0x28] sm:$0xff] 0.0
    %95 = vst [vmem:[#allocation2 + $0x30] sm:$0xff] 0.0
    %96 = vst [vmem:[#allocation2 + $0x38] sm:$0xff] 0.0
    %v97 = vld [vmem:[%s0] sm:$0xff]
    %v98 = vld [vmem:[%s0 + $0x8] sm:$0xff]
    %v99 = vld [vmem:[%s0 + $0x10] sm:$0xff]
    %v100 = vld [vmem:[%s0 + $0x18] sm:$0xff]
    %101 = vst [vmem:[#allocation2 + $0x8] sm:$0xff] %v97
    %102 = vst [vmem:[#allocation2 + $0x10] sm:$0xff] %v98
    %103 = vst [vmem:[#allocation2 + $0x28] sm:$0xff] %v99
    %104 = vst [vmem:[#allocation2 + $0x30] sm:$0xff] %v100
    %v105 = vld [vmem:[#allocation2 + $0x7] sm:$0xff]
    %v106 = vld [vmem:[#allocation2 + $0xf] sm:$0xff]
    %v107 = vld [vmem:[#allocation2 + $0x27] sm:$0xff]
    %v108 = vld [vmem:[#allocation2 + $0x2f] sm:$0xff]
    %v109 = vld [vmem:[#allocation2 + $0x8] sm:$0xff]
    %v110 = vld [vmem:[#allocation2 + $0x10] sm:$0xff]
    %v111 = vld [vmem:[#allocation2 + $0x28] sm:$0xff]
    %v112 = vld [vmem:[#allocation2 + $0x30] sm:$0xff]
    %113 = vrot.lane.b32.xlu0 %v109, 4
    %v114 = vpop.permute.xlu0 %113
    %115 = vrot.lane.b32.xlu0 %v110, 4
    %v116 = vpop.permute.xlu0 %115
    %117 = vrot.lane.b32.xlu0 %v111, 4
    %v118 = vpop.permute.xlu0 %117
    %119 = vrot.lane.b32.xlu0 %v112, 4
    %v120 = vpop.permute.xlu0 %119
    %v121 = vadd.f32 %v105, %v114
    %v122 = vadd.f32 %v106, %v116
    %v123 = vadd.f32 %v107, %v118
    %v124 = vadd.f32 %v108, %v120
    %v125 = vld [vmem:[#allocation2 + $0x9] sm:$0xff]
    %v126 = vld [vmem:[#allocation2 + $0x11] sm:$0xff]
    %v127 = vld [vmem:[#allocation2 + $0x29] sm:$0xff]
    %v128 = vld [vmem:[#allocation2 + $0x31] sm:$0xff]
    %129 = vrot.lane.b32.xlu0 %v125, 8
    %v130 = vpop.permute.xlu0 %129
    %131 = vrot.lane.b32.xlu0 %v126, 8
    %v132 = vpop.permute.xlu0 %131
    %133 = vrot.lane.b32.xlu0 %v127, 8
    %v134 = vpop.permute.xlu0 %133
    %135 = vrot.lane.b32.xlu0 %v128, 8
    %v136 = vpop.permute.xlu0 %135
    %v137 = vadd.f32 %v121, %v130
    %v138 = vadd.f32 %v122, %v132
    %v139 = vadd.f32 %v123, %v134
    %v140 = vadd.f32 %v124, %v136
    %v141 = vpack.c.bf16 %v138, %v137
    %v142 = vpack.c.bf16 %v140, %v139
    %v143 = vld [vmem:[%s1] sm:$0xf]
    %v144 = vld [vmem:[%s1 + $0x4] sm:$0xf]
    %v145 = vld [vmem:[%s1 + $0x8] sm:$0xf]
    %v146 = vld [vmem:[%s1 + $0xc] sm:$0xf]
    %v147 = vld [vmem:[%s1 + $0x10] sm:$0xf]
    %v148 = vld [vmem:[%s1 + $0x14] sm:$0xf]
    %v149 = vld [vmem:[%s1 + $0x18] sm:$0xf]
    %v150 = vld [vmem:[%s1 + $0x1c] sm:$0xf]
    %v151 = vld [vmem:[%s1 + $0x20] sm:$0xf]
    %v152 = vld [vmem:[%s1 + $0x24] sm:$0xf]
    %v153 = vld [vmem:[%s1 + $0x28] sm:$0xf]
    %v154 = vld [vmem:[%s1 + $0x2c] sm:$0xf]
    %v155 = vld [vmem:[%s1 + $0x30] sm:$0xf]
    %v156 = vld [vmem:[%s1 + $0x34] sm:$0xf]
    %v157 = vld [vmem:[%s1 + $0x38] sm:$0xf]
    %v158 = vld [vmem:[%s1 + $0x3c] sm:$0xf]
    %v175 = vunpack.c.l.b16 %v143
    %v176 = vunpack.c.l.b16 %v144
    %v177 = vunpack.c.l.b16 %v145
    %v178 = vunpack.c.l.b16 %v146
    %v179 = vunpack.c.l.b16 %v147
    %v180 = vunpack.c.l.b16 %v148
    %v181 = vunpack.c.l.b16 %v149
    %v182 = vunpack.c.l.b16 %v150
    %v183 = vunpack.c.l.b16 %v151
    %v184 = vunpack.c.l.b16 %v152
    %v185 = vunpack.c.l.b16 %v153
    %v186 = vunpack.c.l.b16 %v154
    %v187 = vunpack.c.l.b16 %v155
    %v188 = vunpack.c.l.b16 %v156
    %v189 = vunpack.c.l.b16 %v157
    %v190 = vunpack.c.l.b16 %v158
    %v191 = vpack.c.b16 %v176, %v175
    %v192 = vpack.c.b16 %v178, %v177
    %v193 = vpack.c.b16 %v180, %v179
    %v194 = vpack.c.b16 %v182, %v181
    %v195 = vpack.c.b16 %v184, %v183
    %v196 = vpack.c.b16 %v186, %v185
    %v197 = vpack.c.b16 %v188, %v187
    %v198 = vpack.c.b16 %v190, %v189
    %207 = vmatpush.bf16.msra.mxu0 %v198
    %208 = vmatpush.bf16.msra.mxu0 %v197
    %209 = vmatpush.bf16.msra.mxu0 %v196
    %210 = vmatpush.bf16.msra.mxu0 %v195
    %211 = vmatpush.bf16.msra.mxu0 %v194
    %212 = vmatpush.bf16.msra.mxu0 %v193
    %213 = vmatpush.bf16.msra.mxu0 %v192
    %214 = vmatpush.bf16.msra.mxu0 %v191
    %215 = vmatmul.bf16.gmra.mxu0 %v141
    %v216 = vpop.f32.mrf.mxu0
    %v217 = vadd.f32 0.0, %v216
    %v218 = vpop.f32.mrf.mxu0
    %v219 = vadd.f32 0.0, %v218
    %220 = vmatmul.bf16.gmra.mxu0 %v142
    %v221 = vpop.f32.mrf.mxu0
    %v222 = vadd.f32 0.0, %v221
    %v223 = vpop.f32.mrf.mxu0
    %v224 = vadd.f32 0.0, %v223
    %225 = vdwg.mxu0
    %v226 = vadd.f32 %v217, %v219
    %v227 = vadd.f32 %v226, %v222
    %v228 = vadd.f32 %v227, %v224
    %v229 = vrot.slane %v228, 4
    %v230 = vadd.f32 %v228, %v229
    %v231 = vrot.slane %v230, 2
    %v232 = vadd.f32 %v230, %v231
    %v233 = vrot.slane %v232, 1
    %v234 = vadd.f32 %v232, %v233
    %v235 = vmul.f32 %v217, %v217
    %v236 = vmul.f32 %v219, %v219
    %v237 = vmul.f32 %v222, %v222
    %v238 = vmul.f32 %v224, %v224
    %v239 = vadd.f32 %v235, %v236
    %v240 = vadd.f32 %v239, %v237
    %v241 = vadd.f32 %v240, %v238
    %v242 = vrot.slane %v241, 4
    %v243 = vadd.f32 %v241, %v242
    %v244 = vrot.slane %v243, 2
    %v245 = vadd.f32 %v243, %v244
    %v246 = vrot.slane %v245, 1
    %v247 = vadd.f32 %v245, %v246
    %v248 = vmul.f32 %v234, 0.03125
    %v249 = vmul.f32 %v247, 0.03125
    %v250 = vmul.f32 %v248, %v248
    %v251 = vsub.f32 %v249, %v250
    %v252 = vmax.f32 %v251, 0.0
    %v253 = vld [vmem:[%s2] sm:$0x1]
    %v254 = vadd.f32 %v252, 1e-05
    %v255 = vrsqrt.pop %v254
    %v256 = vmul.f32 %v255, %v254
    %v257 = vmul.f32 %v256, %v255
    %v258 = vmul.f32 0.5, %v257
    %v259 = vsub.f32 1.5, %v258
    %v260 = vmul.f32 %v255, %v259
    %vm261 = vweird.f32 %v254
    %vm262 = vweird.f32 %v255
    %vm263 = vmor %vm261, %vm262
    %v264 = vsel %vm263, %v255, %v260
    %v265 = vmul.f32 %v253, %v264
    %v266 = vld [vmem:[%s3] sm:$0x1]
    %v267 = vmul.f32 %v248, %v265
    %v268 = vsub.f32 %v266, %v267
    %v270 = vperm.slane %v265, 0
    %v272 = vmul.f32 %v217, %v270
    %v273 = vmul.f32 %v219, %v270
    %v274 = vmul.f32 %v222, %v270
    %v275 = vmul.f32 %v224, %v270
    %v277 = vperm.slane %v268, 0
    %v279 = vadd.f32 %v272, %v277
    %v280 = vadd.f32 %v273, %v277
    %v281 = vadd.f32 %v274, %v277
    %v282 = vadd.f32 %v275, %v277
    %v283 = vmax.f32 %v279, 0.0
    %v284 = vmax.f32 %v280, 0.0
    %v285 = vmax.f32 %v281, 0.0
    %v286 = vmax.f32 %v282, 0.0
    %287 = vst [vmem:[#allocation2 + $0x8] sm:$0xff] %v283
    %288 = vst [vmem:[#allocation2 + $0x10] sm:$0xff] %v284
    %289 = vst [vmem:[#allocation2 + $0x28] sm:$0xff] %v285
    %290 = vst [vmem:[#allocation2 + $0x30] sm:$0xff] %v286
    %v291 = vld [vmem:[#allocation2 + $0x7] sm:$0xff]
    %v292 = vld [vmem:[#allocation2 + $0xf] sm:$0xff]
    %v293 = vld [vmem:[#allocation2 + $0x27] sm:$0xff]
    %v294 = vld [vmem:[#allocation2 + $0x2f] sm:$0xff]
    %v295 = vld [vmem:[#allocation2 + $0x8] sm:$0xff]
    %v296 = vld [vmem:[#allocation2 + $0x10] sm:$0xff]
    %v297 = vld [vmem:[#allocation2 + $0x28] sm:$0xff]
    %v298 = vld [vmem:[#allocation2 + $0x30] sm:$0xff]
    %299 = vrot.lane.b32.xlu0 %v295, 12
    %v300 = vpop.permute.xlu0 %299
    %301 = vrot.lane.b32.xlu0 %v296, 12
    %v302 = vpop.permute.xlu0 %301
    %303 = vrot.lane.b32.xlu0 %v297, 12
    %v304 = vpop.permute.xlu0 %303
    %305 = vrot.lane.b32.xlu0 %v298, 12
    %v306 = vpop.permute.xlu0 %305
    %v307 = vadd.f32 %v291, %v300
    %v308 = vadd.f32 %v292, %v302
    %v309 = vadd.f32 %v293, %v304
    %v310 = vadd.f32 %v294, %v306
    %v311 = vld [vmem:[#allocation2 + $0x9] sm:$0xff]
    %v312 = vld [vmem:[#allocation2 + $0x11] sm:$0xff]
    %v313 = vld [vmem:[#allocation2 + $0x29] sm:$0xff]
    %v314 = vld [vmem:[#allocation2 + $0x31] sm:$0xff]
    %315 = vrot.lane.b32.xlu0 %v311, 24
    %v316 = vpop.permute.xlu0 %315
    %317 = vrot.lane.b32.xlu0 %v312, 24
    %v318 = vpop.permute.xlu0 %317
    %319 = vrot.lane.b32.xlu0 %v313, 24
    %v320 = vpop.permute.xlu0 %319
    %321 = vrot.lane.b32.xlu0 %v314, 24
    %v322 = vpop.permute.xlu0 %321
    %v323 = vadd.f32 %v307, %v316
    %v324 = vadd.f32 %v308, %v318
    %v325 = vadd.f32 %v309, %v320
    %v326 = vadd.f32 %v310, %v322
    %v327 = vpack.c.bf16 %v324, %v323
    %v328 = vpack.c.bf16 %v326, %v325
    %v329 = vld [vmem:[#allocation3] sm:$0xf]
    %v330 = vld [vmem:[#allocation3 + $0x4] sm:$0xf]
    %v331 = vld [vmem:[#allocation3 + $0x8] sm:$0xf]
    %v332 = vld [vmem:[#allocation3 + $0xc] sm:$0xf]
    %v333 = vld [vmem:[#allocation3 + $0x10] sm:$0xf]
    %v334 = vld [vmem:[#allocation3 + $0x14] sm:$0xf]
    %v335 = vld [vmem:[#allocation3 + $0x18] sm:$0xf]
    %v336 = vld [vmem:[#allocation3 + $0x1c] sm:$0xf]
    %v337 = vld [vmem:[#allocation3 + $0x20] sm:$0xf]
    %v338 = vld [vmem:[#allocation3 + $0x24] sm:$0xf]
    %v339 = vld [vmem:[#allocation3 + $0x28] sm:$0xf]
    %v340 = vld [vmem:[#allocation3 + $0x2c] sm:$0xf]
    %v341 = vld [vmem:[#allocation3 + $0x30] sm:$0xf]
    %v342 = vld [vmem:[#allocation3 + $0x34] sm:$0xf]
    %v343 = vld [vmem:[#allocation3 + $0x38] sm:$0xf]
    %v344 = vld [vmem:[#allocation3 + $0x3c] sm:$0xf]
    %v361 = vunpack.c.l.b16 %v329
    %v362 = vunpack.c.l.b16 %v330
    %v363 = vunpack.c.l.b16 %v331
    %v364 = vunpack.c.l.b16 %v332
    %v365 = vunpack.c.l.b16 %v333
    %v366 = vunpack.c.l.b16 %v334
    %v367 = vunpack.c.l.b16 %v335
    %v368 = vunpack.c.l.b16 %v336
    %v369 = vunpack.c.l.b16 %v337
    %v370 = vunpack.c.l.b16 %v338
    %v371 = vunpack.c.l.b16 %v339
    %v372 = vunpack.c.l.b16 %v340
    %v373 = vunpack.c.l.b16 %v341
    %v374 = vunpack.c.l.b16 %v342
    %v375 = vunpack.c.l.b16 %v343
    %v376 = vunpack.c.l.b16 %v344
    %v377 = vpack.c.b16 %v362, %v361
    %v378 = vpack.c.b16 %v364, %v363
    %v379 = vpack.c.b16 %v366, %v365
    %v380 = vpack.c.b16 %v368, %v367
    %v381 = vpack.c.b16 %v370, %v369
    %v382 = vpack.c.b16 %v372, %v371
    %v383 = vpack.c.b16 %v374, %v373
    %v384 = vpack.c.b16 %v376, %v375
    %393 = vmatpush.bf16.msra.mxu0 %v384
    %394 = vmatpush.bf16.msra.mxu0 %v383
    %395 = vmatpush.bf16.msra.mxu0 %v382
    %396 = vmatpush.bf16.msra.mxu0 %v381
    %397 = vmatpush.bf16.msra.mxu0 %v380
    %398 = vmatpush.bf16.msra.mxu0 %v379
    %399 = vmatpush.bf16.msra.mxu0 %v378
    %400 = vmatpush.bf16.msra.mxu0 %v377
    %401 = vmatmul.bf16.gmra.mxu0 %v327
    %v402 = vpop.f32.mrf.mxu0
    %v403 = vadd.f32 0.0, %v402
    %v404 = vpop.f32.mrf.mxu0
    %v405 = vadd.f32 0.0, %v404
    %406 = vmatmul.bf16.gmra.mxu0 %v328
    %v407 = vpop.f32.mrf.mxu0
    %v408 = vadd.f32 0.0, %v407
    %v409 = vpop.f32.mrf.mxu0
    %v410 = vadd.f32 0.0, %v409
    %411 = vdwg.mxu0
    %v412 = vadd.f32 %v403, %v405
    %v413 = vadd.f32 %v412, %v408
    %v414 = vadd.f32 %v413, %v410
    %v415 = vrot.slane %v414, 4
    %v416 = vadd.f32 %v414, %v415
    %v417 = vrot.slane %v416, 2
    %v418 = vadd.f32 %v416, %v417
    %v419 = vrot.slane %v418, 1
    %v420 = vadd.f32 %v418, %v419
    %v421 = vmul.f32 %v403, %v403
    %v422 = vmul.f32 %v405, %v405
    %v423 = vmul.f32 %v408, %v408
    %v424 = vmul.f32 %v410, %v410
    %v425 = vadd.f32 %v421, %v422
    %v426 = vadd.f32 %v425, %v423
    %v427 = vadd.f32 %v426, %v424
    %v428 = vrot.slane %v427, 4
    %v429 = vadd.f32 %v427, %v428
    %v430 = vrot.slane %v429, 2
    %v431 = vadd.f32 %v429, %v430
    %v432 = vrot.slane %v431, 1
    %v433 = vadd.f32 %v431, %v432
    %v434 = vmul.f32 %v420, 0.03125
    %v435 = vmul.f32 %v433, 0.03125
    %v436 = vmul.f32 %v434, %v434
    %v437 = vsub.f32 %v435, %v436
    %v438 = vmax.f32 %v437, 0.0
    %v439 = vld [vmem:[%s5] sm:$0x1]
    %v440 = vadd.f32 %v438, 1e-05
    %v441 = vrsqrt.pop %v440
    %v442 = vmul.f32 %v441, %v440
    %v443 = vmul.f32 %v442, %v441
    %v444 = vmul.f32 0.5, %v443
    %v445 = vsub.f32 1.5, %v444
    %v446 = vmul.f32 %v441, %v445
    %vm447 = vweird.f32 %v440
    %vm448 = vweird.f32 %v441
    %vm449 = vmor %vm447, %vm448
    %v450 = vsel %vm449, %v441, %v446
    %v451 = vmul.f32 %v439, %v450
    %v452 = vld [vmem:[%s6] sm:$0x1]
    %v453 = vmul.f32 %v434, %v451
    %v454 = vsub.f32 %v452, %v453
    %v456 = vperm.slane %v451, 0
    %v458 = vmul.f32 %v403, %v456
    %v459 = vmul.f32 %v405, %v456
    %v460 = vmul.f32 %v408, %v456
    %v461 = vmul.f32 %v410, %v456
    %v463 = vperm.slane %v454, 0
    %v465 = vadd.f32 %v458, %v463
    %v466 = vadd.f32 %v459, %v463
    %v467 = vadd.f32 %v460, %v463
    %v468 = vadd.f32 %v461, %v463
    %v469 = vmax.f32 %v465, 0.0
    %v470 = vmax.f32 %v466, 0.0
    %v471 = vmax.f32 %v467, 0.0
    %v472 = vmax.f32 %v468, 0.0
    %473 = vst [vmem:[#allocation2 + $0x8] sm:$0xff] %v469
    %474 = vst [vmem:[#allocation2 + $0x10] sm:$0xff] %v470
    %475 = vst [vmem:[#allocation2 + $0x28] sm:$0xff] %v471
    %476 = vst [vmem:[#allocation2 + $0x30] sm:$0xff] %v472
    %v477 = vld [vmem:[#allocation2 + $0x8] sm:$0xff]
    %v478 = vld [vmem:[#allocation2 + $0x10] sm:$0xff]
    %v479 = vld [vmem:[#allocation2 + $0x28] sm:$0xff]
    %v480 = vld [vmem:[#allocation2 + $0x30] sm:$0xff]
    %v481 = vld [vmem:[#allocation2 + $0x9] sm:$0xff]
    %v482 = vld [vmem:[#allocation2 + $0x11] sm:$0xff]
    %v483 = vld [vmem:[#allocation2 + $0x29] sm:$0xff]
    %v484 = vld [vmem:[#allocation2 + $0x31] sm:$0xff]
    %485 = vrot.lane.b32.xlu0 %v481, 9
    %v486 = vpop.permute.xlu0 %485
    %487 = vrot.lane.b32.xlu0 %v482, 9
    %v488 = vpop.permute.xlu0 %487
    %489 = vrot.lane.b32.xlu0 %v483, 9
    %v490 = vpop.permute.xlu0 %489
    %491 = vrot.lane.b32.xlu0 %v484, 9
    %v492 = vpop.permute.xlu0 %491
    %v493 = vadd.f32 %v477, %v486
    %v494 = vadd.f32 %v478, %v488
    %v495 = vadd.f32 %v479, %v490
    %v496 = vadd.f32 %v480, %v492
    %v497 = vpack.c.bf16 %v494, %v493
    %v498 = vpack.c.bf16 %v496, %v495
    %v499 = vld [vmem:[#allocation6] sm:$0xf]
    %v500 = vld [vmem:[#allocation6 + $0x4] sm:$0xf]
    %v501 = vld [vmem:[#allocation6 + $0x8] sm:$0xf]
    %v502 = vld [vmem:[#allocation6 + $0xc] sm:$0xf]
    %v503 = vld [vmem:[#allocation6 + $0x10] sm:$0xf]
    %v504 = vld [vmem:[#allocation6 + $0x14] sm:$0xf]
    %v505 = vld [vmem:[#allocation6 + $0x18] sm:$0xf]
    %v506 = vld [vmem:[#allocation6 + $0x1c] sm:$0xf]
    %v507 = vld [vmem:[#allocation6 + $0x20] sm:$0xf]
    %v508 = vld [vmem:[#allocation6 + $0x24] sm:$0xf]
    %v509 = vld [vmem:[#allocation6 + $0x28] sm:$0xf]
    %v510 = vld [vmem:[#allocation6 + $0x2c] sm:$0xf]
    %v511 = vld [vmem:[#allocation6 + $0x30] sm:$0xf]
    %v512 = vld [vmem:[#allocation6 + $0x34] sm:$0xf]
    %v513 = vld [vmem:[#allocation6 + $0x38] sm:$0xf]
    %v514 = vld [vmem:[#allocation6 + $0x3c] sm:$0xf]
    %v531 = vunpack.c.l.b16 %v499
    %v532 = vunpack.c.l.b16 %v500
    %v533 = vunpack.c.l.b16 %v501
    %v534 = vunpack.c.l.b16 %v502
    %v535 = vunpack.c.l.b16 %v503
    %v536 = vunpack.c.l.b16 %v504
    %v537 = vunpack.c.l.b16 %v505
    %v538 = vunpack.c.l.b16 %v506
    %v539 = vunpack.c.l.b16 %v507
    %v540 = vunpack.c.l.b16 %v508
    %v541 = vunpack.c.l.b16 %v509
    %v542 = vunpack.c.l.b16 %v510
    %v543 = vunpack.c.l.b16 %v511
    %v544 = vunpack.c.l.b16 %v512
    %v545 = vunpack.c.l.b16 %v513
    %v546 = vunpack.c.l.b16 %v514
    %v547 = vpack.c.b16 %v532, %v531
    %v548 = vpack.c.b16 %v534, %v533
    %v549 = vpack.c.b16 %v536, %v535
    %v550 = vpack.c.b16 %v538, %v537
    %v551 = vpack.c.b16 %v540, %v539
    %v552 = vpack.c.b16 %v542, %v541
    %v553 = vpack.c.b16 %v544, %v543
    %v554 = vpack.c.b16 %v546, %v545
    %563 = vmatpush.bf16.msra.mxu0 %v554
    %564 = vmatpush.bf16.msra.mxu0 %v553
    %565 = vmatpush.bf16.msra.mxu0 %v552
    %566 = vmatpush.bf16.msra.mxu0 %v551
    %567 = vmatpush.bf16.msra.mxu0 %v550
    %568 = vmatpush.bf16.msra.mxu0 %v549
    %569 = vmatpush.bf16.msra.mxu0 %v548
    %570 = vmatpush.bf16.msra.mxu0 %v547
    %571 = vmatmul.bf16.gmra.mxu0 %v497
    %v572 = vpop.f32.mrf.mxu0
    %v573 = vadd.f32 0.0, %v572
    %v574 = vpop.f32.mrf.mxu0
    %v575 = vadd.f32 0.0, %v574
    %576 = vmatmul.bf16.gmra.mxu0 %v498
    %v577 = vpop.f32.mrf.mxu0
    %v578 = vadd.f32 0.0, %v577
    %v579 = vpop.f32.mrf.mxu0
    %v580 = vadd.f32 0.0, %v579
    %581 = vdwg.mxu0
    %v582 = vadd.f32 %v573, %v575
    %v583 = vadd.f32 %v582, %v578
    %v584 = vadd.f32 %v583, %v580
    %v585 = vrot.slane %v584, 4
    %v586 = vadd.f32 %v584, %v585
    %v587 = vrot.slane %v586, 2
    %v588 = vadd.f32 %v586, %v587
    %v589 = vrot.slane %v588, 1
    %v590 = vadd.f32 %v588, %v589
    %v591 = vmul.f32 %v573, %v573
    %v592 = vmul.f32 %v575, %v575
    %v593 = vmul.f32 %v578, %v578
    %v594 = vmul.f32 %v580, %v580
    %v595 = vadd.f32 %v591, %v592
    %v596 = vadd.f32 %v595, %v593
    %v597 = vadd.f32 %v596, %v594
    %v598 = vrot.slane %v597, 4
    %v599 = vadd.f32 %v597, %v598
    %v600 = vrot.slane %v599, 2
    %v601 = vadd.f32 %v599, %v600
    %v602 = vrot.slane %v601, 1
    %v603 = vadd.f32 %v601, %v602
    %v604 = vmul.f32 %v590, 0.03125
    %v605 = vmul.f32 %v603, 0.03125
    %v606 = vmul.f32 %v604, %v604
    %v607 = vsub.f32 %v605, %v606
    %v608 = vmax.f32 %v607, 0.0
    %v609 = vld [vmem:[%s8] sm:$0x1]
    %v610 = vadd.f32 %v608, 1e-05
    %v611 = vrsqrt.pop %v610
    %v612 = vmul.f32 %v611, %v610
    %v613 = vmul.f32 %v612, %v611
    %v614 = vmul.f32 0.5, %v613
    %v615 = vsub.f32 1.5, %v614
    %v616 = vmul.f32 %v611, %v615
    %vm617 = vweird.f32 %v610
    %vm618 = vweird.f32 %v611
    %vm619 = vmor %vm617, %vm618
    %v620 = vsel %vm619, %v611, %v616
    %v621 = vmul.f32 %v609, %v620
    %v622 = vld [vmem:[%s9] sm:$0x1]
    %v623 = vmul.f32 %v604, %v621
    %v624 = vsub.f32 %v622, %v623
    %v626 = vperm.slane %v621, 0
    %v628 = vmul.f32 %v573, %v626
    %v629 = vmul.f32 %v575, %v626
    %v630 = vmul.f32 %v578, %v626
    %v631 = vmul.f32 %v580, %v626
    %v633 = vperm.slane %v624, 0
    %v635 = vadd.f32 %v628, %v633
    %v636 = vadd.f32 %v629, %v633
    %v637 = vadd.f32 %v630, %v633
    %v638 = vadd.f32 %v631, %v633
    %v639 = vmax.f32 %v635, 0.0
    %v640 = vmax.f32 %v636, 0.0
    %v641 = vmax.f32 %v637, 0.0
    %v642 = vmax.f32 %v638, 0.0
    %v643 = vadd.f32 %v639, %v640
    %v644 = vrot.slane %v643, 4
    %v645 = vadd.f32 %v643, %v644
    %v646 = vrot.slane %v645, 2
    %v647 = vadd.f32 %v645, %v646
    %v648 = vrot.slane %v647, 1
    %v649 = vadd.f32 %v647, %v648
    %v650 = vadd.f32 %v641, %v642
    %v651 = vrot.slane %v650, 4
    %v652 = vadd.f32 %v650, %v651
    %v653 = vrot.slane %v652, 2
    %v654 = vadd.f32 %v652, %v653
    %v655 = vrot.slane %v654, 1
    %v656 = vadd.f32 %v654, %v655
    %v657 = vrcp.pop 16.0
    %v658 = vmul.f32 16.0, %v657
    %v659 = vsub.f32 1.0, %v658
    %v660 = vmul.f32 %v657, %v659
    %v661 = vadd.f32 %v657, %v660
    %vm662 = vweird.f32 %v657
    %v663 = vsel %vm662, %v657, %v661
    %v664 = vmul.f32 %v649, %v663
    %v665 = vmul.f32 %v656, %v663
    %v666 = vpack.c.bf16 %v664, %v664
    %v667 = vpack.c.bf16 %v665, %v665
    %v668 = vld [vmem:[#allocation8] sm:$0xf]
    %v669 = vld [vmem:[#allocation8 + $0x4] sm:$0xf]
    %v670 = vld [vmem:[#allocation8 + $0x8] sm:$0xf]
    %v671 = vld [vmem:[#allocation8 + $0xc] sm:$0xf]
    %v672 = vld [vmem:[#allocation8 + $0x10] sm:$0xf]
    %v673 = vld [vmem:[#allocation8 + $0x14] sm:$0xf]
    %v674 = vld [vmem:[#allocation8 + $0x18] sm:$0xf]
    %v675 = vld [vmem:[#allocation8 + $0x1c] sm:$0xf]
    %v676 = vld [vmem:[#allocation8 + $0x20] sm:$0xf]
    %v677 = vld [vmem:[#allocation8 + $0x24] sm:$0xf]
    %v678 = vld [vmem:[#allocation8 + $0x28] sm:$0xf]
    %v679 = vld [vmem:[#allocation8 + $0x2c] sm:$0xf]
    %v680 = vld [vmem:[#allocation8 + $0x30] sm:$0xf]
    %v681 = vld [vmem:[#allocation8 + $0x34] sm:$0xf]
    %v682 = vld [vmem:[#allocation8 + $0x38] sm:$0xf]
    %v683 = vld [vmem:[#allocation8 + $0x3c] sm:$0xf]
    %v684 = vld [vmem:[%s11] sm:$0x1]
    %v686 = vperm.slane %v684, 0
    %v690 = vunpack.c.l.b16 %v666
    %v691 = vunpack.c.l.b16 %v667
    %vm692 = vcmask 1041409
    %v693 = vsel %vm692, %v691, %v690
    %v694 = vpack.c.b16 %v693, %v693
    %v712 = vunpack.c.l.b16 %v668
    %v713 = vunpack.c.l.b16 %v669
    %v714 = vunpack.c.l.b16 %v670
    %v715 = vunpack.c.l.b16 %v671
    %v716 = vunpack.c.l.b16 %v672
    %v717 = vunpack.c.l.b16 %v673
    %v718 = vunpack.c.l.b16 %v674
    %v719 = vunpack.c.l.b16 %v675
    %v720 = vunpack.c.l.b16 %v676
    %v721 = vunpack.c.l.b16 %v677
    %v722 = vunpack.c.l.b16 %v678
    %v723 = vunpack.c.l.b16 %v679
    %v724 = vunpack.c.l.b16 %v680
    %v725 = vunpack.c.l.b16 %v681
    %v726 = vunpack.c.l.b16 %v682
    %v727 = vunpack.c.l.b16 %v683
    %v728 = vpack.c.b16 %v713, %v712
    %v729 = vpack.c.b16 %v715, %v714
    %v730 = vpack.c.b16 %v717, %v716
    %v731 = vpack.c.b16 %v719, %v718
    %v732 = vpack.c.b16 %v721, %v720
    %v733 = vpack.c.b16 %v723, %v722
    %v734 = vpack.c.b16 %v725, %v724
    %v735 = vpack.c.b16 %v727, %v726
    %744 = vmatpush.bf16.msra.mxu0 %v735
    %745 = vmatpush.bf16.msra.mxu0 %v734
    %746 = vmatpush.bf16.msra.mxu0 %v733
    %747 = vmatpush.bf16.msra.mxu0 %v732
    %748 = vmatpush.bf16.msra.mxu0 %v731
    %749 = vmatpush.bf16.msra.mxu0 %v730
    %750 = vmatpush.bf16.msra.mxu0 %v729
    %751 = vmatpush.bf16.msra.mxu0 %v728
    %752 = vmatmul.bf16.gmra.mxu0 %v694
    %v753 = vpop.f32.mrf.mxu0
    %v754 = vadd.f32 %v686, %v753
    %v755 = vpop.f32.mrf.mxu0
    %756 = vdwg.mxu0
    %vm757 = vcmask 33792
    %v758 = vsel %vm757, %v754, -inf
    %759 = vmax.xlane.f32.xlu0 %v758
    %v760 = vpop.xlane.xlu0 %759
    %v761 = vsub.f32 %v754, %v760
    %v762 = vmul.f32 %v761, 1.442695
    %v763 = vpow.pop %v762
    %v764 = vsel %vm757, %v763, 0.0
    %765 = vadd.xlane.f32.xlu0 %v764
    %v766 = vpop.xlane.xlu0 %765
    %v767 = vlog2.pop %v766
    %v768 = vmul.f32 %v767, 0.6931472
    %v769 = vsub.f32 %v761, %v768
    %770 = vst.msk [vmem:[#allocation9] sm:$0x3] %vm757, %v769
    // Predicated region
    $region62: #{_lambda_.1} parent=1 // pred_check
      _
    $region63: #{_lambda_.1} parent=1 // pred_check_branch
      %772 = sbr.rel (0) target = $region65
    $region64: #{_lambda_.1} parent=1 // pred_region
      %774 = vsyncadd [#allocation5], 0
      %s776 = sshll.u32 [#allocation9], 4
      %s777 = int_to_ptr.vmem [resolvable:$true] %s776
      %s778 = sshll.u32 %s12, 4
      %s779 = int_to_ptr.hbm [resolvable:$true] %s778
      %781 = dma.vmem_to_hbm [thread:$0]  %s777, 32, %s779, [#allocation5]
    $region65: #{_lambda_.1} parent=1 // pred_fallthru
      _
    // Predicated region
    $region66: #{_lambda_.1} parent=1 // pred_check
      _
    $region67: #{_lambda_.1} parent=1 // pred_check_branch
      %783 = sbr.rel (0) target = $region69
    $region68: #{_lambda_.1} parent=1 // pred_region
      %785 = dma.done [#allocation5], 32
    $region69: #{_lambda_.1} parent=1 // pred_fallthru
      _
    %786 = vsyncpa [#allocation4], 1
    %787 = vsyncpa [#allocation7], 1
    %788 = vsyncpa [#allocation5], 1

</llo_original>
